<compile_context>
chip_gen: v7x
topology: tpu7x:2x2x1
jax: 0.10.0
libtpu: 0.0.40
codegen_flags: <defaults>
</compile_context>

<pallas_src>
import jax
import jax.numpy as jnp
from jax.experimental import pallas as pl
from jax.experimental.pallas import tpu as pltpu


# ----------------------------------------------------------------------------
# Kernel 1: forward projection + sinogram ratio  (sino / (A x + eps))
# ----------------------------------------------------------------------------
def _fp_div_kernel(x_ref, sys_t_ref, sino_ref, out_ref, acc_ref):
    # grid = (N blocks, K blocks); K is the reduction (last) axis.
    k = pl.program_id(1)

    @pl.when(k == 0)
    def _():
        acc_ref[...] = jnp.zeros_like(acc_ref)

    acc_ref[...] += jnp.dot(
        x_ref[...].astype(jnp.float32),
        sys_t_ref[...].astype(jnp.float32),
        preferred_element_type=jnp.float32,
    )

    @pl.when(k == pl.num_programs(1) - 1)
    def _():
        denom = acc_ref[...] + 1e-9
        out_ref[...] = (sino_ref[...].astype(jnp.float32) / denom).astype(out_ref.dtype)


# ----------------------------------------------------------------------------
# Kernel 2: back projection + fused ADMM quadratic solve for x
# ----------------------------------------------------------------------------
def _bp_quad_kernel(rho_ref, sino_ref, sys_ref, x_ref, zeta_ref, beta_ref,
                    out_ref, acc_ref):
    # rho_ref: (1,) f32 scalar prefetch (SMEM).  grid = (N blocks, K blocks).
    k = pl.program_id(1)

    @pl.when(k == 0)
    def _():
        acc_ref[...] = jnp.zeros_like(acc_ref)

    acc_ref[...] += jnp.dot(
        sino_ref[...].astype(jnp.float32),
        sys_ref[...].astype(jnp.float32),
        preferred_element_type=jnp.float32,
    )

    @pl.when(k == pl.num_programs(1) - 1)
    def _():
        rho = rho_ref[0]
        x = x_ref[...].astype(jnp.float32)
        zeta = zeta_ref[...].astype(jnp.float32)
        beta = beta_ref[...].astype(jnp.float32)
        correction = acc_ref[...]
        b_q = rho * beta + rho * zeta - 1.0
        c_q = x * correction
        disc = jnp.sqrt(jnp.maximum(b_q * b_q + 4.0 * rho * c_q, 0.0))
        out_ref[...] = ((-b_q + disc) / (2.0 * rho)).astype(out_ref.dtype)


# ----------------------------------------------------------------------------
# Kernel 3: Beta_update   beta + (x - zeta) * eta   (elementwise)
# ----------------------------------------------------------------------------
def _beta_update_kernel(eta_ref, x_ref, zeta_ref, beta_ref, out_ref):
    eta = eta_ref[0]
    x = x_ref[...].astype(jnp.float32)
    z = zeta_ref[...].astype(jnp.float32)
    b = beta_ref[...].astype(jnp.float32)
    out_ref[...] = (b + (x - z) * eta).astype(out_ref.dtype)


# ----------------------------------------------------------------------------
# Helpers
# ----------------------------------------------------------------------------
def _round_up(v, m):
    return ((v + m - 1) // m) * m


def _pad_last(a, target):
    cur = a.shape[-1]
    if cur == target:
        return a
    pad = [(0, 0)] * (a.ndim - 1) + [(0, target - cur)]
    return jnp.pad(a, pad)


def _pad_axis0(a, target):
    cur = a.shape[0]
    if cur == target:
        return a
    pad = [(0, target - cur)] + [(0, 0)] * (a.ndim - 1)
    return jnp.pad(a, pad)


# ----------------------------------------------------------------------------
# Wrappers
# ----------------------------------------------------------------------------
def fp_divide(x_flat, sys_t, sino_flat, *, max_tile=512):
    """sino_flat / (x_flat @ sys_t + 1e-9) as one fused Pallas matmul.

    x_flat:    (M, K)  flattened images     (K = nxd*nxd)
    sys_t:     (K, N)  system matrix transposed  (N = nrd*nphi)
    sino_flat: (M, N)  flattened sinogram
    """
    m, k_dim = x_flat.shape
    n_dim = sys_t.shape[1]

    k_pad = _round_up(k_dim, 128)
    n_pad = _round_up(n_dim, 128)
    tk = min(max_tile, k_pad)
    tn = min(max_tile, n_pad)
    grid = (n_pad // tn, k_pad // tk)

    x_p = _pad_last(x_flat.astype(jnp.float32), k_pad)
    sys_p = _pad_last(_pad_axis0(sys_t.astype(jnp.float32), k_pad), n_pad)
    sino_p = _pad_last(sino_flat.astype(jnp.float32), n_pad)

    out = pl.pallas_call(
        _fp_div_kernel,
        out_shape=jax.ShapeDtypeStruct((m, n_pad), jnp.float32),
        grid_spec=pltpu.PrefetchScalarGridSpec(
            num_scalar_prefetch=0,
            grid=grid,
            in_specs=[
                pl.BlockSpec((m, tk), lambda j, k: (0, k)),
                pl.BlockSpec((tk, tn), lambda j, k: (k, j)),
                pl.BlockSpec((m, tn), lambda j, k: (0, j)),
            ],
            out_specs=pl.BlockSpec((m, tn), lambda j, k: (0, j)),
            scratch_shapes=[pltpu.VMEM((m, tn), jnp.float32)],
        ),
        compiler_params=pltpu.CompilerParams(
            dimension_semantics=("parallel", "arbitrary"),
            vmem_limit_bytes=32 * 1024 * 1024,
        ),
        cost_estimate=pl.CostEstimate(
            flops=2 * m * k_pad * n_pad + 2 * m * n_pad,
            transcendentals=0,
            bytes_accessed=(m * k_pad + k_pad * n_pad + 2 * m * n_pad) * 4,
        ),
    )(x_p, sys_p, sino_p)
    return out[:, :n_dim]


def bp_quadratic(sino_domain, sys_mat, x_flat, zeta_flat, beta_flat, rho, *,
                 max_tile=512):
    """correction = sino_domain @ sys_mat, then fused ADMM quadratic solve.

    sino_domain: (M, K)   K = nrd*nphi
    sys_mat:     (K, N)   N = nxd*nxd
    x/zeta/beta: (M, N)   image-space operands for the quadratic epilogue
    rho:         (1,) f32 already clamped to [0.98, 1.02]
    """
    m, k_dim = sino_domain.shape
    n_dim = sys_mat.shape[1]

    k_pad = _round_up(k_dim, 128)
    n_pad = _round_up(n_dim, 128)
    tk = min(max_tile, k_pad)
    tn = min(max_tile, n_pad)
    grid = (n_pad // tn, k_pad // tk)

    sino_p = _pad_last(sino_domain.astype(jnp.float32), k_pad)
    sys_p = _pad_last(_pad_axis0(sys_mat.astype(jnp.float32), k_pad), n_pad)
    x_p = _pad_last(x_flat.astype(jnp.float32), n_pad)
    zeta_p = _pad_last(zeta_flat.astype(jnp.float32), n_pad)
    beta_p = _pad_last(beta_flat.astype(jnp.float32), n_pad)

    # index_maps receive the scalar-prefetch ref as a trailing positional arg.
    spec_lhs = pl.BlockSpec((m, tk), lambda j, k, rho_ref: (0, k))
    spec_sys = pl.BlockSpec((tk, tn), lambda j, k, rho_ref: (k, j))
    spec_img = pl.BlockSpec((m, tn), lambda j, k, rho_ref: (0, j))

    out = pl.pallas_call(
        _bp_quad_kernel,
        out_shape=jax.ShapeDtypeStruct((m, n_pad), jnp.float32),
        grid_spec=pltpu.PrefetchScalarGridSpec(
            num_scalar_prefetch=1,
            grid=grid,
            in_specs=[spec_lhs, spec_sys, spec_img, spec_img, spec_img],
            out_specs=spec_img,
            scratch_shapes=[pltpu.VMEM((m, tn), jnp.float32)],
        ),
        compiler_params=pltpu.CompilerParams(
            dimension_semantics=("parallel", "arbitrary"),
            vmem_limit_bytes=32 * 1024 * 1024,
        ),
        cost_estimate=pl.CostEstimate(
            flops=2 * m * k_pad * n_pad + 10 * m * n_pad,
            transcendentals=m * n_pad,               # sqrt in the epilogue
            bytes_accessed=(m * k_pad + k_pad * n_pad + 5 * m * n_pad) * 4,
        ),
    )(rho, sino_p, sys_p, x_p, zeta_p, beta_p)
    return out[:, :n_dim]


def beta_update(x, zeta, beta, eta, *, tile_rows=2048):
    """beta + (x - zeta) * eta on lane-dense (rows, 128) slabs."""
    assert x.shape == zeta.shape == beta.shape
    orig_shape = x.shape
    orig_dtype = x.dtype
    lanes = 128
    total = int(x.size)

    rows_needed = pl.cdiv(total, lanes)
    block_rows = min(int(tile_rows), rows_needed)
    block_rows = ((block_rows + 7) // 8) * 8                 # (8, 128) alignment
    grid_n = pl.cdiv(rows_needed, block_rows)
    if grid_n < 2 and rows_needed >= 16:                     # allow megacore split
        block_rows = ((pl.cdiv(rows_needed, 2) + 7) // 8) * 8
        grid_n = pl.cdiv(rows_needed, block_rows)

    padded_rows = grid_n * block_rows
    padded_total = padded_rows * lanes

    def _prep(a):
        flat = a.reshape(-1)
        if padded_total != total:
            flat = jnp.pad(flat, (0, padded_total - total))
        return flat.reshape(padded_rows, lanes)

    x2, z2, b2 = _prep(x), _prep(zeta), _prep(beta)
    eta1 = jnp.asarray(eta, dtype=jnp.float32).reshape(1)

    row_spec = pl.BlockSpec((block_rows, lanes), lambda i, eta_ref: (i, 0))
    itemsize = jnp.dtype(orig_dtype).itemsize
    block_bytes = block_rows * lanes * itemsize
    vmem_limit = max(32 * 1024 * 1024, 2 * 4 * block_bytes + (4 << 20))

    out2 = pl.pallas_call(
        _beta_update_kernel,
        out_shape=jax.ShapeDtypeStruct((padded_rows, lanes), orig_dtype),
        grid_spec=pltpu.PrefetchScalarGridSpec(
            num_scalar_prefetch=1,
            grid=(grid_n,),
            in_specs=[row_spec, row_spec, row_spec],
            out_specs=row_spec,
        ),
        compiler_params=pltpu.CompilerParams(
            dimension_semantics=("parallel",),
            vmem_limit_bytes=int(vmem_limit),
        ),
        cost_estimate=pl.CostEstimate(
            flops=2 * total,
            transcendentals=0,
            bytes_accessed=4 * total * itemsize,
        ),
    )(eta1, x2, z2, b2)

    out_flat = out2.reshape(-1)
    if padded_total != total:
        out_flat = out_flat[:total]
    return out_flat.reshape(orig_shape)


def admm_x_update(sino_for_reconstruction, gt_sin, sys_mat, x, zeta, beta,
                  rho_param, *, nxd, nrd, nphi, depth=5, num_its=1, max_tile=512):
    """X_update.forward: MAP-EM iterations with the ADMM quadratic solve."""
    batch = x.shape[0]
    m = batch * depth
    rho = jnp.clip(jnp.asarray(rho_param, jnp.float32), 0.98, 1.02).reshape(1)
    sys_t = sys_mat.T                                  # (nxd*nxd, nrd*nphi)

    x_flat = x.reshape(m, nxd * nxd)
    zeta_flat = zeta.reshape(m, nxd * nxd)
    beta_flat = beta.reshape(m, nxd * nxd)

    sino = sino_for_reconstruction
    sin_domain_loss = jnp.zeros_like(gt_sin)
    for _ in range(num_its):
        # TODO(synk): Sino_modify_net is an undefined learned sub-net in the
        # reference code; treated as identity here.
        sino_mod = sino
        sino_flat = sino_mod.reshape(m, nphi * nrd)
        sino_domain = fp_divide(x_flat, sys_t, sino_flat, max_tile=max_tile)
        x_flat = bp_quadratic(sino_domain, sys_mat, x_flat, zeta_flat,
                              beta_flat, rho, max_tile=max_tile)
        sin_domain_loss = gt_sin - sino_mod
        sino = sino_mod

    return x_flat.reshape(batch, 1, depth, nxd, nxd), sin_domain_loss


def admm_net_block_forward(sino_for_reconstruction, sys_mat, gt_sin,
                           x=None, z=None, beta=None, *, nxd, nrd, nphi,
                           num_its, rho_param, eta, max_tile=512):
    """ADMM_NET_Block.forward (X_update -> [Z_update TODO] -> Beta_update)."""
    batch = sino_for_reconstruction.shape[0]
    shape = (batch, 1, 5, nxd, nxd)
    if x is None:
        x = jnp.zeros(shape, jnp.float32)
    if z is None:
        z = jnp.zeros(shape, jnp.float32)
    if beta is None:
        beta = jnp.zeros(shape, jnp.float32)

    x, sino_loss = admm_x_update(sino_for_reconstruction, gt_sin, sys_mat,
                                 x, z, beta, rho_param,
                                 nxd=nxd, nrd=nrd, nphi=nphi, depth=5,
                                 num_its=num_its, max_tile=max_tile)
    # TODO(synk): Z_update (Conv3d encoder/decoder + F_transform / F_inverse
    # learned transforms, soft-threshold, consistency & Frobenius losses) uses
    # sub-nets that are undefined in the reference code; z is passed through.
    z_new = z
    beta_new = beta_update(x, z_new, beta, eta)
    return x, z_new, beta_new, sino_loss


if __name__ == "__main__":
    key = jax.random.PRNGKey(0)
    k_sys, k_sino, k_gt, k_x, k_z, k_b = jax.random.split(key, 6)

    batch, nxd, nrd, nphi, depth, num_its = 2, 16, 16, 16, 5, 2

    sys_mat = jax.random.uniform(k_sys, (nrd * nphi, nxd * nxd), dtype=jnp.float32)
    sino = jax.random.uniform(k_sino, (batch, 1, depth, nphi, nrd),
                              dtype=jnp.float32) + 0.1
    gt_sin = jax.random.uniform(k_gt, (batch, 1, depth, nphi, nrd), dtype=jnp.float32)
    x0 = jax.random.uniform(k_x, (batch, 1, depth, nxd, nxd), dtype=jnp.float32) + 0.1
    z0 = jax.random.uniform(k_z, (batch, 1, depth, nxd, nxd), dtype=jnp.float32)
    beta0 = jax.random.uniform(k_b, (batch, 1, depth, nxd, nxd), dtype=jnp.float32)

    rho_param = jnp.array([1.0], dtype=jnp.float32)     # X_update.rho_param init
    eta = jnp.array([0.001], dtype=jnp.float32)         # Beta_update.eta init

    # max_tile=128 so the small demo still exercises the multi-block
    # accumulate+epilogue matmul path; real-size problems keep the 512 default.
    x_new, z_new, beta_new, sino_loss = admm_net_block_forward(
        sino, sys_mat, gt_sin, x0, z0, beta0,
        nxd=nxd, nrd=nrd, nphi=nphi, num_its=num_its,
        rho_param=rho_param, eta=eta, max_tile=128)
    jax.block_until_ready((x_new, z_new, beta_new, sino_loss))

    # ---------------- pure-JAX reference ------------------------------------
    def fp_ref(img):
        flat = img.reshape(batch * depth, nxd * nxd)
        proj = jnp.matmul(flat, sys_mat.T, precision=jax.lax.Precision.HIGHEST)
        return proj.reshape(batch, 1, depth, nphi, nrd)

    def bp_ref(s):
        flat = s.reshape(batch * depth, nrd * nphi)
        img = jnp.matmul(flat, sys_mat, precision=jax.lax.Precision.HIGHEST)
        return img.reshape(batch, 1, depth, nxd, nxd)

    rho = jnp.clip(rho_param, 0.98, 1.02)
    x_ref = x0
    loss_ref = jnp.zeros_like(gt_sin)
    sino_ref = sino
    for _ in range(num_its):
        denom = fp_ref(x_ref) + 1e-9
        sino_mod = sino_ref                               # identity Sino_modify_net
        sino_domain = sino_mod / denom
        correction = bp_ref(sino_domain)
        a_q = rho
        b_q = rho * beta0 + rho * z0 - 1.0
        c_q = x_ref * correction
        disc = jnp.sqrt(jnp.maximum(b_q ** 2 + 4.0 * a_q * c_q, 0.0))
        x_ref = (-b_q + disc) / (2.0 * a_q)
        loss_ref = gt_sin - sino_mod
        sino_ref = sino_mod
    beta_ref = beta0 + (x_ref - z0) * eta[0]

    assert x_new.shape == (batch, 1, depth, nxd, nxd)
    # MXU matmul pass count may differ from XLA's dot -> loose matmul tolerance.
    assert jnp.allclose(x_new, x_ref, atol=2e-2, rtol=2e-2), \
        float(jnp.max(jnp.abs(x_new - x_ref)))
    assert jnp.allclose(sino_loss, loss_ref, atol=1e-6, rtol=1e-6)
    assert jnp.allclose(beta_new, beta_ref, atol=1e-3, rtol=1e-3), \
        float(jnp.max(jnp.abs(beta_new - beta_ref)))

    print("KERNEL_OK")
</pallas_src>

<mosaic_0001>
module attributes {stable_mosaic.version = 11 : i64} {
  func.func @_fp_div_kernel(%arg0: i32, %arg1: i32, %arg2: memref<10x128xf32, #tpu.memory_space<vmem>>, %arg3: memref<128x128xf32, #tpu.memory_space<vmem>>, %arg4: memref<10x128xf32, #tpu.memory_space<vmem>>, %arg5: memref<10x128xf32, #tpu.memory_space<vmem>>, %arg6: memref<10x128xf32, #tpu.memory_space<vmem>>) attributes {dimension_semantics = [#tpu.dimension_semantics<parallel>, #tpu.dimension_semantics<arbitrary>], iteration_bounds = array<i64: 2, 2>, scalar_prefetch = 0 : i64, scratch_operands = 1 : i64, tpu.core_type = #tpu.core_type<tc>, window_params = [{transform_indices = @transform_0, window_bounds = array<i64: 10, 128>}, {transform_indices = @transform_1, window_bounds = array<i64: 128, 128>}, {transform_indices = @transform_2, window_bounds = array<i64: 10, 128>}, {transform_indices = @transform_3, window_bounds = array<i64: 10, 128>}]} {
    %c0_i32 = arith.constant 0 : i32
    %0 = arith.cmpi eq, %arg1, %c0_i32 : i32
    %1 = arith.extui %0 : i1 to i32
    %c0_i32_0 = arith.constant 0 : i32
    %2 = arith.cmpi ne, %1, %c0_i32_0 : i32
    scf.if %2 {
      %cst_9 = arith.constant 0.000000e+00 : f32
      %12 = vector.broadcast %cst_9 : f32 to vector<10x128xf32>
      %c0_10 = arith.constant 0 : index
      %c0_11 = arith.constant 0 : index
      %13 = vector.load %arg6[%c0_10, %c0_11] : memref<10x128xf32, #tpu.memory_space<vmem>>, vector<10x128xf32>
      tpu.vector_store %arg6[%c0_10, %c0_11], %12 {strides = array<i32>} : memref<10x128xf32, #tpu.memory_space<vmem>>, vector<10x128xf32>,
    } else {
    }
    %c0 = arith.constant 0 : index
    %c0_1 = arith.constant 0 : index
    %3 = vector.load %arg6[%c0, %c0_1] : memref<10x128xf32, #tpu.memory_space<vmem>>, vector<10x128xf32>
    %c0_2 = arith.constant 0 : index
    %c0_3 = arith.constant 0 : index
    %4 = vector.load %arg2[%c0_2, %c0_3] : memref<10x128xf32, #tpu.memory_space<vmem>>, vector<10x128xf32>
    %c0_4 = arith.constant 0 : index
    %c0_5 = arith.constant 0 : index
    %5 = vector.load %arg3[%c0_4, %c0_5] : memref<128x128xf32, #tpu.memory_space<vmem>>, vector<128x128xf32>
    %cst = arith.constant dense<0.000000e+00> : vector<10x128xf32>
    %6 = tpu.matmul %4, %5, %cst {dimension_numbers = #tpu.dot_dimension_numbers<[1], [0], [0], [1], [0, 0, 1, 1], [], []>} : vector<10x128xf32>, vector<128x128xf32>, vector<10x128xf32> -> vector<10x128xf32>
    %7 = arith.addf %3, %6 : vector<10x128xf32>
    %c0_6 = arith.constant 0 : index
    %c0_7 = arith.constant 0 : index
    %8 = vector.load %arg6[%c0_6, %c0_7] : memref<10x128xf32, #tpu.memory_space<vmem>>, vector<10x128xf32>
    tpu.vector_store %arg6[%c0_6, %c0_7], %7 {strides = array<i32>} : memref<10x128xf32, #tpu.memory_space<vmem>>, vector<10x128xf32>,
    %c1_i32 = arith.constant 1 : i32
    %9 = arith.cmpi eq, %arg1, %c1_i32 : i32
    %10 = arith.extui %9 : i1 to i32
    %c0_i32_8 = arith.constant 0 : i32
    %11 = arith.cmpi ne, %10, %c0_i32_8 : i32
    scf.if %11 {
      %c0_9 = arith.constant 0 : index
      %c0_10 = arith.constant 0 : index
      %12 = vector.load %arg6[%c0_9, %c0_10] : memref<10x128xf32, #tpu.memory_space<vmem>>, vector<10x128xf32>
      %cst_11 = arith.constant 9.99999971E-10 : f32
      %13 = vector.broadcast %cst_11 : f32 to vector<10x128xf32>
      %14 = arith.addf %12, %13 : vector<10x128xf32>
      %c0_12 = arith.constant 0 : index
      %c0_13 = arith.constant 0 : index
      %15 = vector.load %arg4[%c0_12, %c0_13] : memref<10x128xf32, #tpu.memory_space<vmem>>, vector<10x128xf32>
      %16 = arith.divf %15, %14 : vector<10x128xf32>
      %c0_14 = arith.constant 0 : index
      %c0_15 = arith.constant 0 : index
      %17 = vector.load %arg5[%c0_14, %c0_15] : memref<10x128xf32, #tpu.memory_space<vmem>>, vector<10x128xf32>
      tpu.vector_store %arg5[%c0_14, %c0_15], %16 {strides = array<i32>} : memref<10x128xf32, #tpu.memory_space<vmem>>, vector<10x128xf32>,
    } else {
    }
    return
  }
  func.func @transform_0(%arg0: i32, %arg1: i32) -> (i32, i32) {
    %c0_i32 = arith.constant 0 : i32
    %c0_i32_0 = arith.constant 0 : i32
    return %c0_i32, %arg1 : i32, i32
  }
  func.func @transform_1(%arg0: i32, %arg1: i32) -> (i32, i32) {
    %c0_i32 = arith.constant 0 : i32
    return %arg1, %arg0 : i32, i32
  }
  func.func @transform_2(%arg0: i32, %arg1: i32) -> (i32, i32) {
    %c0_i32 = arith.constant 0 : i32
    %c0_i32_0 = arith.constant 0 : i32
    return %c0_i32, %arg0 : i32, i32
  }
  func.func @transform_3(%arg0: i32, %arg1: i32) -> (i32, i32) {
    %c0_i32 = arith.constant 0 : i32
    %c0_i32_0 = arith.constant 0 : i32
    return %c0_i32, %arg0 : i32, i32
  }
}

</mosaic_0001>

<llo_original>
// kernel: tpu_custom_call.1
$region0: #{tpu_custom_call.1}
  #allocation0 [shape = 'u32[]', space=smem, size = 0x4, offset = 0x4, fixed_abs, tag = 'smem constant byte address 0x4 - core index']
  #allocation1 [shape = 'u32[144,128]{1,0:T(1,128)}', space=vmem, size = 0x12000, scoped, tag = 'internal scratch']
  #allocation2 [shape = 'f32[10,128]{1,0:T(8,128)}', space=vmem, size = 0x2000, scoped, tag = 'scratch operand']
  %s0 = inlined_call_operand.hbm [shape: f32[10,256], index: 0, kind: input, shape index: {}]
  %s1 = inlined_call_operand.hbm [shape: f32[256,256], index: 1, kind: input, shape index: {}]
  %s2 = inlined_call_operand.hbm [shape: f32[10,256], index: 2, kind: input, shape index: {}]
  %s3 = inlined_call_operand.hbm [shape: f32[10,256], index: 3, kind: output, shape index: {}]
  %s4 = sld [smem:[#allocation0]]
  $region65: #{tpu_custom_call.1} parent=0
    _
  %s6 = ssub.s32 1, %s4
  %s7 = scalar_select 0, %s6, %s4
  $region1: #{tpu_custom_call.1} parent=0
    #allocation3 [shape = 'u8[16384]{0}', space=vmem, size = 0x4000, scoped, tag = 'input window, operand 0']
    #allocation4 [shape = 's32[2]{0}', space=sflag, size = 0x8, scoped, tag = 'scoped memory for tpu_custom_call.1']
    #allocation5 [shape = 's32[2]{0}', space=sflag, size = 0x8, scoped, tag = 'scoped memory for tpu_custom_call.1']
    #allocation6 [shape = 'u8[131072]{0}', space=vmem, size = 0x20000, scoped, tag = 'input window, operand 1']
    #allocation7 [shape = 's32[2]{0}', space=sflag, size = 0x8, scoped, tag = 'scoped memory for tpu_custom_call.1']
    #allocation8 [shape = 'u8[16384]{0}', space=vmem, size = 0x4000, scoped, tag = 'input window, operand 2']
    #allocation9 [shape = 'u8[16384]{0}', space=vmem, size = 0x4000, scoped, tag = 'output window, operand 0']
    %8 = vsyncpa [#allocation4], 0
    %s9 = scalar_lea.sflag [#allocation4], 1
    %10 = vsyncpa %s9, 0
    %11 = vsyncpa [#allocation7], 0
    %s12 = scalar_lea.sflag [#allocation7], 1
    %13 = vsyncpa %s12, 0
    %14 = vsyncpa [#allocation5], 0
    %s15 = scalar_lea.sflag [#allocation5], 1
    %16 = vsyncpa %s15, 0
    loop: start=0, step=1, limit=6
    $region2: #{tpu_custom_call.1} parent=1 // loop_pre_header
      _
    $region3: #{tpu_custom_call.1} parent=1 // loop_header
      %s18 = sphi 0, %s22
      %p19 = scmp.ge.s32.totalorder %s18, 6
      %s25 = sphi 0, %s37
      %s26 = sphi 0, %s33
      %s27 = sphi 0, %s25
      %s28 = sphi 0, %s26
      %s29 = sphi 0, %s27
      %s30 = sphi 0, %s28
      %s40 = sphi 0, %s42
      %s43 = sphi 0, %s40
      %s44 = sphi 0, %s43
      %s60 = sphi 0, %s44
      %s68 = sphi 0, %s70
      %s71 = sphi 0, %s68
      %s72 = sphi 0, %s71
      %s88 = sphi 0, %s72
      %s94 = sphi 0, %s96
      %s97 = sphi 0, %s94
      %s98 = sphi 0, %s97
      %s114 = sphi 0, %s98
      %s120 = sphi 0, %s122
      %s123 = sphi 0, %s120
      %s124 = sphi 0, %s123
      %s140 = sphi 0, %s124
    $region4: #{tpu_custom_call.1} parent=1 // loop_header_branch
      %21 = sbr.rel (%p19) target = $region8
    $region5: #{tpu_custom_call.1} parent=1 // loop_body
      %s23 = ssub.s32 %s18, 1
      %s24 = ssub.s32 %s18, 2
      %s31 = sadd.s32 1, %s26
      %p32 = scmp.ge.s32.totalorder %s31, 2
      %s33 = scalar_select %p32, 0, %s31
      %s34 = sadd.s32 1, %s25
      %s35 = scalar_select %p32, %s34, %s25
      %p36 = scmp.ge.s32.totalorder %s35, 2
      %s37 = scalar_select %p36, 0, %s35
      %s38 = ssub.s32 %s26, %s33
      %p39 = scmp.eq.s32.totalorder %s38, 0
      %s41 = sadd.s32 %s40, 1
      %s42 = scalar_select %p39, %s40, %s41
      %p45 = pneg %p39
      %p46 = scmp.eq.s32.totalorder %s18, 3
      %p47 = por %p45, %p46
      %p48 = scmp.ne.s32.totalorder %s40, %s43
      %p49 = scmp.eq.s32.totalorder %s18, 0
      %p50 = por %p48, %p49
      %p51 = scmp.ne.s32.totalorder %s40, %s43
      %p52 = scmp.eq.s32.totalorder %s23, 3
      %p53 = por %p51, %p52
      %p54 = scmp.ne.s32.totalorder %s43, %s44
      %p55 = scmp.eq.s32.totalorder %s23, 0
      %p56 = por %p54, %p55
      %p57 = scmp.ne.s32.totalorder %s43, %s44
      %p58 = scmp.eq.s32.totalorder %s24, 3
      %p59 = por %p57, %p58
      %p61 = scmp.ne.s32.totalorder %s44, %s60
      %p62 = scmp.eq.s32.totalorder %s24, 0
      %p63 = por %p61, %p62
      %s64 = ssub.s32 %s26, %s33
      %s65 = ssub.s32 %s25, %s37
      %s66 = sor.u32 %s64, %s65
      %p67 = scmp.eq.s32.totalorder %s66, 0
      %s69 = sadd.s32 %s68, 1
      %s70 = scalar_select %p67, %s68, %s69
      %p73 = pneg %p67
      %p74 = scmp.eq.s32.totalorder %s18, 3
      %p75 = por %p73, %p74
      %p76 = scmp.ne.s32.totalorder %s68, %s71
      %p77 = scmp.eq.s32.totalorder %s18, 0
      %p78 = por %p76, %p77
      %p79 = scmp.ne.s32.totalorder %s68, %s71
      %p80 = scmp.eq.s32.totalorder %s23, 3
      %p81 = por %p79, %p80
      %p82 = scmp.ne.s32.totalorder %s71, %s72
      %p83 = scmp.eq.s32.totalorder %s23, 0
      %p84 = por %p82, %p83
      %p85 = scmp.ne.s32.totalorder %s71, %s72
      %p86 = scmp.eq.s32.totalorder %s24, 3
      %p87 = por %p85, %p86
      %p89 = scmp.ne.s32.totalorder %s72, %s88
      %p90 = scmp.eq.s32.totalorder %s24, 0
      %p91 = por %p89, %p90
      %s92 = ssub.s32 %s25, %s37
      %p93 = scmp.eq.s32.totalorder %s92, 0
      %s95 = sadd.s32 %s94, 1
      %s96 = scalar_select %p93, %s94, %s95
      %p99 = pneg %p93
      %p100 = scmp.eq.s32.totalorder %s18, 3
      %p101 = por %p99, %p100
      %p102 = scmp.ne.s32.totalorder %s94, %s97
      %p103 = scmp.eq.s32.totalorder %s18, 0
      %p104 = por %p102, %p103
      %p105 = scmp.ne.s32.totalorder %s94, %s97
      %p106 = scmp.eq.s32.totalorder %s23, 3
      %p107 = por %p105, %p106
      %p108 = scmp.ne.s32.totalorder %s97, %s98
      %p109 = scmp.eq.s32.totalorder %s23, 0
      %p110 = por %p108, %p109
      %p111 = scmp.ne.s32.totalorder %s97, %s98
      %p112 = scmp.eq.s32.totalorder %s24, 3
      %p113 = por %p111, %p112
      %p115 = scmp.ne.s32.totalorder %s98, %s114
      %p116 = scmp.eq.s32.totalorder %s24, 0
      %p117 = por %p115, %p116
      %s118 = ssub.s32 %s25, %s37
      %p119 = scmp.eq.s32.totalorder %s118, 0
      %s121 = sadd.s32 %s120, 1
      %s122 = scalar_select %p119, %s120, %s121
      %p125 = pneg %p119
      %p126 = scmp.eq.s32.totalorder %s18, 3
      %p127 = por %p125, %p126
      %p128 = scmp.ne.s32.totalorder %s120, %s123
      %p129 = scmp.eq.s32.totalorder %s18, 0
      %p130 = por %p128, %p129
      %p131 = scmp.ne.s32.totalorder %s120, %s123
      %p132 = scmp.eq.s32.totalorder %s23, 3
      %p133 = por %p131, %p132
      %p134 = scmp.ne.s32.totalorder %s123, %s124
      %p135 = scmp.eq.s32.totalorder %s23, 0
      %p136 = por %p134, %p135
      %p137 = scmp.ne.s32.totalorder %s123, %s124
      %p138 = scmp.eq.s32.totalorder %s24, 3
      %p139 = por %p137, %p138
      %p141 = scmp.ne.s32.totalorder %s124, %s140
      %p142 = scmp.eq.s32.totalorder %s24, 0
      %p143 = por %p141, %p142
      %p144 = scmp.le.s32.totalorder 1, %s18
      %p145 = scmp.lt.s32.totalorder %s18, 5
      %p146 = pnand %p144, %p145
      %p147 = pneg %p146
      // Predicated region
      $region9: #{tpu_custom_call.1} parent=5 // pred_check
        _
      $region10: #{tpu_custom_call.1} parent=5 // pred_check_branch
        %149 = sbr.rel (%p146) target = $region12
      $region11: #{tpu_custom_call.1} parent=5 // pred_region
        %s150 = ssub.s32 %s18, 1
      $region12: #{tpu_custom_call.1} parent=5 // pred_fallthru
        _
      %p151 = scmp.lt.s32.totalorder %s18, 4
      // Predicated region
      $region13: #{tpu_custom_call.1} parent=5 // pred_check
        %p152 = pneg %p151
      $region14: #{tpu_custom_call.1} parent=5 // pred_check_branch
        %154 = sbr.rel (%p152) target = $region16
      $region15: #{tpu_custom_call.1} parent=5 // pred_region
        // Predicated region
        $region17: #{tpu_custom_call.1} parent=15 // pred_check
          %p155 = pneg %p50
        $region18: #{tpu_custom_call.1} parent=15 // pred_check_branch
          %157 = sbr.rel (%p155) target = $region20
        $region19: #{tpu_custom_call.1} parent=15 // pred_region
          %s158 = sand.u32 %s40, 1
          %s159 = scalar_lea.sflag [#allocation4], %s158
          %s160 = sand.u32 %s40, 1
          %s161 = smul.addr %s160, 16
          %s162 = scalar_lea.vmem [#allocation3], %s161
          %s164 = ssub.s32 256, 256
          %165 = vsyncadd %s159, %s164
          %s166 = smul.addr %s26, 128
          %s167 = scalar_lea.hbm %s0, %s166
          %s168 = sshll.u32 %s162, 4
          %s169 = int_to_ptr.vmem [resolvable:$true] %s168
          %174 = dma.hbm_to_vmem [thread:$0]  %s167, 256, %s169, %s159, 256, 128, 8
        $region20: #{tpu_custom_call.1} parent=15 // pred_fallthru
          _
        // Predicated region
        $region21: #{tpu_custom_call.1} parent=15 // pred_check
          %p175 = pneg %p78
        $region22: #{tpu_custom_call.1} parent=15 // pred_check_branch
          %177 = sbr.rel (%p175) target = $region24
        $region23: #{tpu_custom_call.1} parent=15 // pred_region
          %s178 = sand.u32 %s18, 1
          %s179 = scalar_lea.sflag [#allocation7], %s178
          %s180 = sand.u32 %s68, 1
          %s181 = smul.addr %s180, 128
          %s182 = scalar_lea.vmem [#allocation6], %s181
          %s183 = smul.u32 16, %s26
          %s185 = ssub.s32 2048, 2048
          %186 = vsyncadd %s179, %s185
          %s187 = smul.addr %s183, 2
          %s188 = sadd.s32 %s25, %s187
          %s189 = smul.addr %s188, 128
          %s190 = scalar_lea.hbm %s1, %s189
          %s191 = sshll.u32 %s182, 4
          %s192 = int_to_ptr.vmem [resolvable:$true] %s191
          %197 = dma.hbm_to_vmem [thread:$0]  %s190, 2048, %s192, %s179, 256, 128, 8
        $region24: #{tpu_custom_call.1} parent=15 // pred_fallthru
          _
        // Predicated region
        $region25: #{tpu_custom_call.1} parent=15 // pred_check
          %p198 = pneg %p104
        $region26: #{tpu_custom_call.1} parent=15 // pred_check_branch
          %200 = sbr.rel (%p198) target = $region28
        $region27: #{tpu_custom_call.1} parent=15 // pred_region
          %s201 = sand.u32 %s18, 1
          %s202 = scalar_lea.sflag [#allocation7], %s201
          %s203 = sand.u32 %s94, 1
          %s204 = smul.addr %s203, 16
          %s205 = scalar_lea.vmem [#allocation8], %s204
          %s207 = ssub.s32 256, 256
          %208 = vsyncadd %s202, %s207
          %s209 = smul.addr %s25, 128
          %s210 = scalar_lea.hbm %s2, %s209
          %s211 = sshll.u32 %s205, 4
          %s212 = int_to_ptr.vmem [resolvable:$true] %s211
          %217 = dma.hbm_to_vmem [thread:$0]  %s210, 256, %s212, %s202, 256, 128, 8
        $region28: #{tpu_custom_call.1} parent=15 // pred_fallthru
          _
      $region16: #{tpu_custom_call.1} parent=5 // pred_fallthru
        _
      %p218 = scmp.le.s32.totalorder 1, %s18
      %p219 = scmp.lt.s32.totalorder %s18, 5
      %p220 = pnand %p218, %p219
      %p221 = pneg %p220
      // Predicated region
      $region29: #{tpu_custom_call.1} parent=5 // pred_check
        _
      $region30: #{tpu_custom_call.1} parent=5 // pred_check_branch
        %223 = sbr.rel (%p220) target = $region32
      $region31: #{tpu_custom_call.1} parent=5 // pred_region
        %s224 = ssub.s32 %s18, 1
        %s225 = sand.u32 %s43, 1
        %s226 = scalar_lea.sflag [#allocation4], %s225
        %s227 = sand.u32 %s43, 1
        %s228 = smul.addr %s227, 16
        %s229 = scalar_lea.vmem [#allocation3], %s228
        // Predicated region
        $region33: #{tpu_custom_call.1} parent=31 // pred_check
          %p230 = pneg %p56
        $region34: #{tpu_custom_call.1} parent=31 // pred_check_branch
          %232 = sbr.rel (%p230) target = $region36
        $region35: #{tpu_custom_call.1} parent=31 // pred_region
          %233 = dma.done %s226, 256
        $region36: #{tpu_custom_call.1} parent=31 // pred_fallthru
          _
        %s234 = sand.u32 %s23, 1
        %s235 = scalar_lea.sflag [#allocation7], %s234
        %s236 = sand.u32 %s71, 1
        %s237 = smul.addr %s236, 128
        %s238 = scalar_lea.vmem [#allocation6], %s237
        // Predicated region
        $region37: #{tpu_custom_call.1} parent=31 // pred_check
          %p239 = pneg %p84
        $region38: #{tpu_custom_call.1} parent=31 // pred_check_branch
          %241 = sbr.rel (%p239) target = $region40
        $region39: #{tpu_custom_call.1} parent=31 // pred_region
          %242 = dma.done %s235, 2048
        $region40: #{tpu_custom_call.1} parent=31 // pred_fallthru
          _
        %s243 = sand.u32 %s23, 1
        %s244 = scalar_lea.sflag [#allocation7], %s243
        %s245 = sand.u32 %s97, 1
        %s246 = smul.addr %s245, 16
        %s247 = scalar_lea.vmem [#allocation8], %s246
        // Predicated region
        $region41: #{tpu_custom_call.1} parent=31 // pred_check
          %p248 = pneg %p110
        $region42: #{tpu_custom_call.1} parent=31 // pred_check_branch
          %250 = sbr.rel (%p248) target = $region44
        $region43: #{tpu_custom_call.1} parent=31 // pred_region
          %251 = dma.done %s244, 256
        $region44: #{tpu_custom_call.1} parent=31 // pred_fallthru
          _
        %s252 = sand.u32 %s43, 1
        %s253 = scalar_lea.sflag [#allocation4], %s252
        %s254 = sand.u32 %s43, 1
        %s255 = smul.addr %s254, 16
        %s256 = scalar_lea.vmem [#allocation3], %s255
        %p257 = pneg %p56
        %p258 = pneg %p53
        %s259 = sand.u32 %s23, 1
        %s260 = scalar_lea.sflag [#allocation7], %s259
        %s261 = sand.u32 %s71, 1
        %s262 = smul.addr %s261, 128
        %s263 = scalar_lea.vmem [#allocation6], %s262
        %p264 = pneg %p84
        %p265 = pneg %p81
        %s266 = sand.u32 %s23, 1
        %s267 = scalar_lea.sflag [#allocation7], %s266
        %s268 = sand.u32 %s97, 1
        %s269 = smul.addr %s268, 16
        %s270 = scalar_lea.vmem [#allocation8], %s269
        %p271 = pneg %p110
        %p272 = pneg %p107
        %p273 = pneg %p136
        %p274 = pneg %p133
        %s275 = sand.u32 %s123, 1
        %s276 = scalar_lea.sflag [#allocation5], %s275
        %s277 = sand.u32 %s123, 1
        %s278 = smul.addr %s277, 16
        %s279 = scalar_lea.vmem [#allocation9], %s278
        %s280 = smul.u32 16, %s28
        %p281 = scmp.eq.s32.totalorder %s28, 0
        // Predicated region
        $region45: #{tpu_custom_call.1} parent=31 // pred_check
          %p282 = pneg %p281
        $region46: #{tpu_custom_call.1} parent=31 // pred_check_branch
          %284 = sbr.rel (%p282) target = $region48
        $region47: #{tpu_custom_call.1} parent=31 // pred_region
          %285 = vst [vmem:[#allocation2] sm:$0xff] 0.0
          %286 = vst [vmem:[#allocation2 + $0x8] sm:$0x3] 0.0
        $region48: #{tpu_custom_call.1} parent=31 // pred_fallthru
          _
        %v287 = vld [vmem:[#allocation2] sm:$0xff]
        %v288 = vld [vmem:[#allocation2 + $0x8] sm:$0x3]
        %v289 = vld [vmem:[%s229] sm:$0xff]
        %v290 = vld [vmem:[%s229 + $0x8] sm:$0x3]
        %v291 = vld [vmem:[%s238] sm:$0xff]
        %v292 = vld [vmem:[%s238 + $0x8] sm:$0xff]
        %v293 = vld [vmem:[%s238 + $0x10] sm:$0xff]
        %v294 = vld [vmem:[%s238 + $0x18] sm:$0xff]
        %v295 = vld [vmem:[%s238 + $0x20] sm:$0xff]
        %v296 = vld [vmem:[%s238 + $0x28] sm:$0xff]
        %v297 = vld [vmem:[%s238 + $0x30] sm:$0xff]
        %v298 = vld [vmem:[%s238 + $0x38] sm:$0xff]
        %v299 = vld [vmem:[%s238 + $0x40] sm:$0xff]
        %v300 = vld [vmem:[%s238 + $0x48] sm:$0xff]
        %v301 = vld [vmem:[%s238 + $0x50] sm:$0xff]
        %v302 = vld [vmem:[%s238 + $0x58] sm:$0xff]
        %v303 = vld [vmem:[%s238 + $0x60] sm:$0xff]
        %v304 = vld [vmem:[%s238 + $0x68] sm:$0xff]
        %v305 = vld [vmem:[%s238 + $0x70] sm:$0xff]
        %v306 = vld [vmem:[%s238 + $0x78] sm:$0xff]
        %307 = vmatprep.subr.mxu0 0.0
        %308 = vmatpush1.msra.mxu0 %v291
        %309 = vmatprep.subr.mxu0 0.0
        %310 = vmatpush1.msra.mxu0 %v292
        %311 = vmatprep.subr.mxu0 0.0
        %312 = vmatpush1.msra.mxu0 %v293
        %313 = vmatprep.subr.mxu0 0.0
        %314 = vmatpush1.msra.mxu0 %v294
        %315 = vmatprep.subr.mxu0 0.0
        %316 = vmatpush1.msra.mxu0 %v295
        %317 = vmatprep.subr.mxu0 0.0
        %318 = vmatpush1.msra.mxu0 %v296
        %319 = vmatprep.subr.mxu0 0.0
        %320 = vmatpush1.msra.mxu0 %v297
        %321 = vmatprep.subr.mxu0 0.0
        %322 = vmatpush1.msra.mxu0 %v298
        %323 = vmatprep.subr.mxu0 0.0
        %324 = vmatpush1.msra.mxu0 %v299
        %325 = vmatprep.subr.mxu0 0.0
        %326 = vmatpush1.msra.mxu0 %v300
        %327 = vmatprep.subr.mxu0 0.0
        %328 = vmatpush1.msra.mxu0 %v301
        %329 = vmatprep.subr.mxu0 0.0
        %330 = vmatpush1.msra.mxu0 %v302
        %331 = vmatprep.subr.mxu0 0.0
        %332 = vmatpush1.msra.mxu0 %v303
        %333 = vmatprep.subr.mxu0 0.0
        %334 = vmatpush1.msra.mxu0 %v304
        %335 = vmatprep.subr.mxu0 0.0
        %336 = vmatpush1.msra.mxu0 %v305
        %337 = vmatprep.subr.mxu0 0.0
        %338 = vmatpush1.msra.mxu0 %v306
        %339 = vmatprep.subr.mxu0 0.0
        %340 = vmatpush1.msra.mxu0 0.0
        %341 = vmatprep.subr.mxu0 0.0
        %342 = vmatpush1.msra.mxu0 0.0
        %343 = vmatprep.subr.mxu0 0.0
        %344 = vmatpush1.msra.mxu0 0.0
        %345 = vmatprep.subr.mxu0 0.0
        %346 = vmatpush1.msra.mxu0 0.0
        %347 = vmatprep.subr.mxu0 0.0
        %348 = vmatpush1.msra.mxu0 0.0
        %349 = vmatprep.subr.mxu0 0.0
        %350 = vmatpush1.msra.mxu0 0.0
        %351 = vmatprep.subr.mxu0 0.0
        %352 = vmatpush1.msra.mxu0 0.0
        %353 = vmatprep.subr.mxu0 0.0
        %354 = vmatpush1.msra.mxu0 0.0
        %355 = vmatprep.subr.mxu0 0.0
        %356 = vmatpush1.msra.mxu0 0.0
        %357 = vmatprep.subr.mxu0 0.0
        %358 = vmatpush1.msra.mxu0 0.0
        %359 = vmatprep.subr.mxu0 0.0
        %360 = vmatpush1.msra.mxu0 0.0
        %361 = vmatprep.subr.mxu0 0.0
        %362 = vmatpush1.msra.mxu0 0.0
        %363 = vmatprep.subr.mxu0 0.0
        %364 = vmatpush1.msra.mxu0 0.0
        %365 = vmatprep.subr.mxu0 0.0
        %366 = vmatpush1.msra.mxu0 0.0
        %367 = vmatprep.subr.mxu0 0.0
        %368 = vmatpush1.msra.mxu0 0.0
        %369 = vmatprep.subr.mxu0 0.0
        %370 = vmatpush1.msra.mxu0 0.0
        %371 = vmatprep.mubr.f32.mxu0 0.0
        %372 = vmatmul.mubr.f32.gmra.mrb[0].mxu0 %v289
        %v373 = vpop.f32.mrb[0].mxu0
        %v374 = vadd.f32 0.0, %v373
        %v375 = vpop.f32.mrb[0].mxu0
        %376 = vmatprep.mubr.f32.mxu0 0.0
        %377 = vmatmul.mubr.f32.gmra.mrb[0].mxu0 %v290
        %v378 = vpop.f32.mrb[0].mxu0
        %v379 = vadd.f32 0.0, %v378
        %v380 = vpop.f32.mrb[0].mxu0
        %381 = vdwg.mxu0
        %v382 = vadd.f32 %v287, %v374
        %v383 = vadd.f32 %v288, %v379
        %384 = vst [vmem:[#allocation2] sm:$0xff] %v382
        %385 = vst [vmem:[#allocation2 + $0x8] sm:$0x3] %v383
        %p386 = scmp.eq.s32.totalorder %s28, 1
        // Predicated region
        $region49: #{tpu_custom_call.1} parent=31 // pred_check
          %p387 = pneg %p386
        $region50: #{tpu_custom_call.1} parent=31 // pred_check_branch
          %389 = sbr.rel (%p387) target = $region52
        $region51: #{tpu_custom_call.1} parent=31 // pred_region
          %v390 = vld [vmem:[#allocation2] sm:$0xff]
          %v391 = vld [vmem:[#allocation2 + $0x8] sm:$0x3]
          %v392 = vadd.f32 %v390, 1e-09
          %v393 = vadd.f32 %v391, 1e-09
          %v394 = vld [vmem:[%s247] sm:$0xff]
          %v395 = vld [vmem:[%s247 + $0x8] sm:$0x3]
          %v396 = vrcp.pop %v392
          %v397 = vmul.f32 %v394, %v396
          %v398 = vrcp.pop %v393
          %v399 = vmul.f32 %v395, %v398
          %400 = vst [vmem:[%s279] sm:$0xff] %v397
          %401 = vst [vmem:[%s279 + $0x8] sm:$0x3] %v399
        $region52: #{tpu_custom_call.1} parent=31 // pred_fallthru
          _
        %s402 = sand.u32 %s123, 1
        %s403 = scalar_lea.sflag [#allocation5], %s402
        %s404 = sand.u32 %s123, 1
        %s405 = smul.addr %s404, 16
        %s406 = scalar_lea.vmem [#allocation9], %s405
        // Predicated region
        $region53: #{tpu_custom_call.1} parent=31 // pred_check
          %p407 = pneg %p133
        $region54: #{tpu_custom_call.1} parent=31 // pred_check_branch
          %409 = sbr.rel (%p407) target = $region56
        $region55: #{tpu_custom_call.1} parent=31 // pred_region
          %s411 = ssub.s32 256, 256
          %412 = vsyncadd %s403, %s411
          %s413 = smul.addr %s27, 128
          %s414 = scalar_lea.hbm %s3, %s413
          %s415 = sshll.u32 %s406, 4
          %s416 = int_to_ptr.vmem [resolvable:$true] %s415
          %421 = dma.vmem_to_hbm [thread:$0]  %s416, 256, %s414, %s403, 128, 256, 8
        $region56: #{tpu_custom_call.1} parent=31 // pred_fallthru
          _
      $region32: #{tpu_custom_call.1} parent=5 // pred_fallthru
        _
      %p422 = scmp.le.s32.totalorder 2, %s18
      // Predicated region
      $region57: #{tpu_custom_call.1} parent=5 // pred_check
        %p423 = pneg %p422
      $region58: #{tpu_custom_call.1} parent=5 // pred_check_branch
        %425 = sbr.rel (%p423) target = $region60
      $region59: #{tpu_custom_call.1} parent=5 // pred_region
        %s426 = ssub.s32 %s18, 2
        // Predicated region
        $region61: #{tpu_custom_call.1} parent=59 // pred_check
          %p427 = pneg %p139
        $region62: #{tpu_custom_call.1} parent=59 // pred_check_branch
          %429 = sbr.rel (%p427) target = $region64
        $region63: #{tpu_custom_call.1} parent=59 // pred_region
          %s430 = sand.u32 %s124, 1
          %s431 = scalar_lea.sflag [#allocation5], %s430
          %s432 = sand.u32 %s124, 1
          %s433 = smul.addr %s432, 16
          %s434 = scalar_lea.vmem [#allocation9], %s433
          %435 = dma.done %s431, 256
        $region64: #{tpu_custom_call.1} parent=59 // pred_fallthru
          _
      $region60: #{tpu_custom_call.1} parent=5 // pred_fallthru
        _
    $region6: #{tpu_custom_call.1} parent=1 // loop_footer
      %s22 = sadd.s32 1, %s18
    $region7: #{tpu_custom_call.1} parent=1 // loop_footer_branch
      %17 = sbr.rel target = $region3
    $region8: #{tpu_custom_call.1} parent=1 // loop_exit
      _
    %436 = vsyncpa [#allocation4], 1
    %s437 = scalar_lea.sflag [#allocation4], 1
    %438 = vsyncpa %s437, 1
    %439 = vsyncpa [#allocation7], 1
    %s440 = scalar_lea.sflag [#allocation7], 1
    %441 = vsyncpa %s440, 1
    %442 = vsyncpa [#allocation5], 1
    %s443 = scalar_lea.sflag [#allocation5], 1
    %444 = vsyncpa %s443, 1

</llo_original>
